<compile_context>
chip_gen: v7x
topology: tpu7x:2x2x1
jax: 0.10.0
libtpu: 0.0.40
codegen_flags: <defaults>
</compile_context>

<pallas_src>
import functools

import jax
import jax.numpy as jnp
from jax.experimental import pallas as pl
from jax.experimental.pallas import tpu as pltpu


IN_FEATURES = 1000
HIDDEN = 100
NUM_CLASSES = 2

H_PAD = 128   # hidden padded to one lane group (MXU/lane aligned)
C_PAD = 128   # class columns padded to one lane group

_NEG_BIG = -1e30  # bias for padded class columns -> exp underflows to 0


def _round_up(x, m):
    return (x + m - 1) // m * m


def _classifier_kernel(x_ref, w1_ref, b1_ref, w2_ref, b2_ref, o_ref, *,
                       mxu_dtype, approx_softmax):
    # x: [TB, 1000] (feats dtype), w1: [1000, 128] mxu_dtype, b1: [1, 128] f32,
    # w2: [128, 128] mxu_dtype, b2: [1, 128] f32 (padded cols = -1e30),
    # o: [TB, 2] f32.
    x = x_ref[...].astype(mxu_dtype)

    # Linear(1000 -> 100) + ReLU: MXU matmul with f32 accumulation,
    # bias add / ReLU in f32.
    h = jnp.dot(x, w1_ref[...], preferred_element_type=jnp.float32)
    h = jnp.maximum(h + b1_ref[...], 0.0)

    # Linear(100 -> 2); class columns padded to 128 (padded columns have
    # zero weights and a -1e30 bias, so their exp underflows to exactly 0).
    logits = jnp.dot(h.astype(mxu_dtype), w2_ref[...],
                     preferred_element_type=jnp.float32) + b2_ref[...]

    # Numerically stable softmax over the lane axis; padded lanes contribute 0,
    # so the 128-lane max/sum equal the 2-class ones.
    m = jnp.max(logits, axis=-1, keepdims=True)
    e = jnp.exp(logits - m)
    denom = jnp.sum(e, axis=-1, keepdims=True)
    top = e[:, :NUM_CLASSES]
    if approx_softmax:
        probs = top * pl.reciprocal(denom, approx=True)   # EUP slot, ~free
    else:
        probs = top / denom                               # exact path
    o_ref[...] = probs.astype(o_ref.dtype)


def classifier_forward(feats, w1, b1, w2, b2, *, tb=512, mxu_dtype=jnp.bfloat16):
    """feats: [B, 1000] (f32 or bf16) -> [B, 2] float32 softmax probabilities.

    w1: [1000, 100], b1: [100], w2: [100, 2], b2: [2].

    mxu_dtype=bfloat16 (default) casts the matmul operands to bf16 with f32
    accumulation (fast MXU path on every TPU generation, required for full
    rate on v5e); mxu_dtype=float32 is the exact path.  feats is read directly
    at its natural dtype/shape — pass bf16 feats to halve the dominant HBM
    stream.
    """
    B = feats.shape[0]

    # Batch tile: cap so the grid has >= 2 steps when that doesn't exceed B
    # (v7x megacore gets both TensorCores busy); keep non-final blocks a
    # multiple of 8 sublanes.  A single block with dims == array dims is
    # always legal for tiny batches.
    half = _round_up(pl.cdiv(B, 2), 8)
    if half < B:
        tb_eff = max(8, (min(tb, half) // 8) * 8)
    else:
        tb_eff = B
    grid = (pl.cdiv(B, tb_eff),)

    # Tiny parameters, padded once to lane-aligned shapes (exact: zero pads
    # contribute nothing; padded class bias = -1e30).
    w1_p = jnp.zeros((IN_FEATURES, H_PAD), mxu_dtype).at[:, :HIDDEN].set(
        w1.astype(mxu_dtype))
    b1_p = jnp.zeros((1, H_PAD), jnp.float32).at[0, :HIDDEN].set(
        b1.astype(jnp.float32))
    w2_p = jnp.zeros((H_PAD, C_PAD), mxu_dtype).at[:HIDDEN, :NUM_CLASSES].set(
        w2.astype(mxu_dtype))
    b2_p = jnp.full((1, C_PAD), _NEG_BIG, jnp.float32).at[0, :NUM_CLASSES].set(
        b2.astype(jnp.float32))

    feat_bytes = jnp.dtype(feats.dtype).itemsize
    par_bytes = jnp.dtype(mxu_dtype).itemsize
    cost = pl.CostEstimate(
        flops=2 * B * IN_FEATURES * H_PAD + 2 * B * H_PAD * C_PAD,
        transcendentals=B * C_PAD,
        bytes_accessed=(B * IN_FEATURES * feat_bytes                        # feats
                        + (IN_FEATURES * H_PAD + H_PAD * C_PAD) * par_bytes  # w1, w2
                        + (H_PAD + C_PAD) * 4                               # b1, b2
                        + B * NUM_CLASSES * 4),                             # output
    )

    kernel = functools.partial(
        _classifier_kernel,
        mxu_dtype=mxu_dtype,
        approx_softmax=(jnp.dtype(mxu_dtype) != jnp.dtype(jnp.float32)),
    )

    return pl.pallas_call(
        kernel,
        out_shape=jax.ShapeDtypeStruct((B, NUM_CLASSES), jnp.float32),
        grid=grid,
        in_specs=[
            pl.BlockSpec((tb_eff, IN_FEATURES), lambda i: (i, 0)),  # batch-tiled feats
            pl.BlockSpec((IN_FEATURES, H_PAD), lambda i: (0, 0)),   # VMEM-resident params
            pl.BlockSpec((1, H_PAD), lambda i: (0, 0)),
            pl.BlockSpec((H_PAD, C_PAD), lambda i: (0, 0)),
            pl.BlockSpec((1, C_PAD), lambda i: (0, 0)),
        ],
        out_specs=pl.BlockSpec((tb_eff, NUM_CLASSES), lambda i: (i, 0)),
        compiler_params=pltpu.CompilerParams(
            dimension_semantics=("parallel",)),   # megacore splits the batch
        cost_estimate=cost,
    )(feats, w1_p, b1_p, w2_p, b2_p)


def init_params(key):
    """Deterministic nn.Linear-style init: U(-1/sqrt(fan_in), 1/sqrt(fan_in))."""
    k1, k2, k3, k4 = jax.random.split(key, 4)
    bound1 = 1.0 / jnp.sqrt(IN_FEATURES)
    bound2 = 1.0 / jnp.sqrt(HIDDEN)
    w1 = jax.random.uniform(k1, (IN_FEATURES, HIDDEN), jnp.float32, -bound1, bound1)
    b1 = jax.random.uniform(k2, (HIDDEN,), jnp.float32, -bound1, bound1)
    w2 = jax.random.uniform(k3, (HIDDEN, NUM_CLASSES), jnp.float32, -bound2, bound2)
    b2 = jax.random.uniform(k4, (NUM_CLASSES,), jnp.float32, -bound2, bound2)
    return w1, b1, w2, b2


def _reference(feats, w1, b1, w2, b2):
    h = jnp.maximum(feats @ w1 + b1, 0.0)
    logits = h @ w2 + b2
    return jax.nn.softmax(logits, axis=1)


if __name__ == "__main__":
    key = jax.random.PRNGKey(0)
    k_feats, k_params = jax.random.split(key)

    B = 2
    # Backbone output features (see TODO above): [B, 1000]
    feats = jax.random.normal(k_feats, (B, IN_FEATURES), jnp.float32)
    w1, b1, w2, b2 = init_params(k_params)

    ref = _reference(feats, w1, b1, w2, b2)

    # Exact f32-MXU path — matches the PyTorch head.
    out_f32 = jax.block_until_ready(
        classifier_forward(feats, w1, b1, w2, b2, mxu_dtype=jnp.float32))
    assert out_f32.shape == (B, NUM_CLASSES)
    assert jnp.allclose(out_f32, ref, atol=1e-5, rtol=1e-5), "f32 mismatch vs reference"
    assert jnp.allclose(jnp.sum(out_f32, axis=1), 1.0, atol=1e-5), "softmax rows must sum to 1"

    # Default bf16-MXU path (f32 feats read directly, cast to bf16 in-kernel).
    out_bf16 = jax.block_until_ready(classifier_forward(feats, w1, b1, w2, b2))
    assert out_bf16.shape == (B, NUM_CLASSES)
    assert jnp.allclose(out_bf16, ref, atol=5e-2), "bf16 path diverged"
    assert jnp.allclose(jnp.sum(out_bf16, axis=1), 1.0, atol=1e-2)

    # bf16 feats (as a bf16 backbone would emit) — halves the dominant HBM stream.
    out_bf16_feats = jax.block_until_ready(
        classifier_forward(feats.astype(jnp.bfloat16), w1, b1, w2, b2))
    assert jnp.allclose(out_bf16_feats, ref, atol=5e-2), "bf16-feats path diverged"

    print("KERNEL_OK")
</pallas_src>

<mosaic_0001>
module attributes {stable_mosaic.version = 11 : i64} {
  func.func @_classifier_kernel(%arg0: i32, %arg1: memref<2x1000xf32, #tpu.memory_space<vmem>>, %arg2: memref<1000x128xf32, #tpu.memory_space<vmem>>, %arg3: memref<1x128xf32, #tpu.memory_space<vmem>>, %arg4: memref<128x128xf32, #tpu.memory_space<vmem>>, %arg5: memref<1x128xf32, #tpu.memory_space<vmem>>, %arg6: memref<2x2xf32, #tpu.memory_space<vmem>>) attributes {dimension_semantics = [#tpu.dimension_semantics<parallel>], iteration_bounds = array<i64: 1>, scalar_prefetch = 0 : i64, scratch_operands = 0 : i64, tpu.core_type = #tpu.core_type<tc>, window_params = [{transform_indices = @transform_0, window_bounds = array<i64: 2, 1000>}, {pipeline_mode = #tpu.pipeline_mode<synchronous>, transform_indices = @transform_1, window_bounds = array<i64: 1000, 128>}, {pipeline_mode = #tpu.pipeline_mode<synchronous>, transform_indices = @transform_2, window_bounds = array<i64: 1, 128>}, {pipeline_mode = #tpu.pipeline_mode<synchronous>, transform_indices = @transform_3, window_bounds = array<i64: 128, 128>}, {pipeline_mode = #tpu.pipeline_mode<synchronous>, transform_indices = @transform_4, window_bounds = array<i64: 1, 128>}, {transform_indices = @transform_5, window_bounds = array<i64: 2, 2>}]} {
    %c0 = arith.constant 0 : index
    %c0_0 = arith.constant 0 : index
    %0 = vector.load %arg1[%c0, %c0_0] : memref<2x1000xf32, #tpu.memory_space<vmem>>, vector<2x1000xf32>
    %c0_1 = arith.constant 0 : index
    %c0_2 = arith.constant 0 : index
    %1 = vector.load %arg2[%c0_1, %c0_2] : memref<1000x128xf32, #tpu.memory_space<vmem>>, vector<1000x128xf32>
    %cst = arith.constant dense<0.000000e+00> : vector<2x128xf32>
    %2 = tpu.matmul %0, %1, %cst {dimension_numbers = #tpu.dot_dimension_numbers<[1], [0], [0], [1], [0, 0, 1, 1], [], []>} : vector<2x1000xf32>, vector<1000x128xf32>, vector<2x128xf32> -> vector<2x128xf32>
    %c0_3 = arith.constant 0 : index
    %c0_4 = arith.constant 0 : index
    %3 = vector.load %arg3[%c0_3, %c0_4] : memref<1x128xf32, #tpu.memory_space<vmem>>, vector<1x128xf32>
    %4 = vector.broadcast %3 : vector<1x128xf32> to vector<2x128xf32>
    %5 = arith.addf %2, %4 : vector<2x128xf32>
    %cst_5 = arith.constant 0.000000e+00 : f32
    %6 = vector.broadcast %cst_5 : f32 to vector<2x128xf32>
    %7 = arith.maximumf %5, %6 : vector<2x128xf32>
    %c0_6 = arith.constant 0 : index
    %c0_7 = arith.constant 0 : index
    %8 = vector.load %arg4[%c0_6, %c0_7] : memref<128x128xf32, #tpu.memory_space<vmem>>, vector<128x128xf32>
    %cst_8 = arith.constant dense<0.000000e+00> : vector<2x128xf32>
    %9 = tpu.matmul %7, %8, %cst_8 {dimension_numbers = #tpu.dot_dimension_numbers<[1], [0], [0], [1], [0, 0, 1, 1], [], []>} : vector<2x128xf32>, vector<128x128xf32>, vector<2x128xf32> -> vector<2x128xf32>
    %c0_9 = arith.constant 0 : index
    %c0_10 = arith.constant 0 : index
    %10 = vector.load %arg5[%c0_9, %c0_10] : memref<1x128xf32, #tpu.memory_space<vmem>>, vector<1x128xf32>
    %11 = vector.broadcast %10 : vector<1x128xf32> to vector<2x128xf32>
    %12 = arith.addf %9, %11 : vector<2x128xf32>
    %cst_11 = arith.constant dense<0xFF800000> : vector<2xf32>
    %13 = vector.multi_reduction <maximumf>, %12, %cst_11 [1] : vector<2x128xf32> to vector<2xf32>
    %14 = vector.shape_cast %13 : vector<2xf32> to vector<2x1xf32>
    %15 = vector.broadcast %14 : vector<2x1xf32> to vector<2x128xf32>
    %16 = arith.subf %12, %15 : vector<2x128xf32>
    %17 = math.exp %16 : vector<2x128xf32>
    %cst_12 = arith.constant dense<0.000000e+00> : vector<2xf32>
    %18 = vector.multi_reduction <add>, %17, %cst_12 [1] : vector<2x128xf32> to vector<2xf32>
    %19 = vector.shape_cast %18 : vector<2xf32> to vector<2x1xf32>
    %20 = vector.extract_strided_slice %17 {offsets = [0, 0], sizes = [2, 2], strides = [1, 1]} : vector<2x128xf32> to vector<2x2xf32>
    %21 = vector.broadcast %19 : vector<2x1xf32> to vector<2x2xf32>
    %22 = arith.divf %20, %21 : vector<2x2xf32>
    %c0_13 = arith.constant 0 : index
    %c0_14 = arith.constant 0 : index
    %23 = vector.load %arg6[%c0_13, %c0_14] : memref<2x2xf32, #tpu.memory_space<vmem>>, vector<2x2xf32>
    tpu.vector_store %arg6[%c0_13, %c0_14], %22 {strides = array<i32>} : memref<2x2xf32, #tpu.memory_space<vmem>>, vector<2x2xf32>,
    return
  }
  func.func @transform_0(%arg0: i32) -> (i32, i32) {
    %c0_i32 = arith.constant 0 : i32
    %c0_i32_0 = arith.constant 0 : i32
    return %arg0, %c0_i32 : i32, i32
  }
  func.func @transform_1(%arg0: i32) -> (i32, i32) {
    %c0_i32 = arith.constant 0 : i32
    %c0_i32_0 = arith.constant 0 : i32
    %c0_i32_1 = arith.constant 0 : i32
    return %c0_i32, %c0_i32_0 : i32, i32
  }
  func.func @transform_2(%arg0: i32) -> (i32, i32) {
    %c0_i32 = arith.constant 0 : i32
    %c0_i32_0 = arith.constant 0 : i32
    %c0_i32_1 = arith.constant 0 : i32
    return %c0_i32, %c0_i32_0 : i32, i32
  }
  func.func @transform_3(%arg0: i32) -> (i32, i32) {
    %c0_i32 = arith.constant 0 : i32
    %c0_i32_0 = arith.constant 0 : i32
    %c0_i32_1 = arith.constant 0 : i32
    return %c0_i32, %c0_i32_0 : i32, i32
  }
  func.func @transform_4(%arg0: i32) -> (i32, i32) {
    %c0_i32 = arith.constant 0 : i32
    %c0_i32_0 = arith.constant 0 : i32
    %c0_i32_1 = arith.constant 0 : i32
    return %c0_i32, %c0_i32_0 : i32, i32
  }
  func.func @transform_5(%arg0: i32) -> (i32, i32) {
    %c0_i32 = arith.constant 0 : i32
    %c0_i32_0 = arith.constant 0 : i32
    return %arg0, %c0_i32 : i32, i32
  }
}

</mosaic_0001>

<llo_original>
// kernel: tpu_custom_call.1
$region0: #{tpu_custom_call.1}
  #allocation0 [shape = 'u32[]', space=smem, size = 0x4, offset = 0x4, fixed_abs, tag = 'smem constant byte address 0x4 - core index']
  #allocation1 [shape = 'u32[144,128]{1,0:T(1,128)}', space=vmem, size = 0x12000, scoped, tag = 'internal scratch']
  %s0 = inlined_call_operand.hbm [shape: f32[2,1000], index: 0, kind: input, shape index: {}]
  %s1 = inlined_call_operand.hbm [shape: f32[1000,128], index: 1, kind: input, shape index: {}]
  %s2 = inlined_call_operand.vmem [shape: f32[1,128], index: 2, kind: input, shape index: {}]
  %s3 = inlined_call_operand.hbm [shape: f32[128,128], index: 3, kind: input, shape index: {}]
  %s4 = inlined_call_operand.vmem [shape: f32[1,128], index: 4, kind: input, shape index: {}]
  %s5 = inlined_call_operand.hbm [shape: f32[2,2], index: 5, kind: output, shape index: {}]
  %s6 = sld [smem:[#allocation0]]
  $region42: #{tpu_custom_call.1} parent=0
    _
  %s8 = ssub.s32 1, %s6
  %s9 = scalar_select 0, %s8, %s6
  $region1: #{tpu_custom_call.1} parent=0
    #allocation2 [shape = 'u8[8192]{0}', space=vmem, size = 0x2000, scoped, tag = 'input window, operand 0, single buffered']
    #allocation3 [shape = 's32[1]{0}', space=sflag, size = 0x4, scoped, tag = 'scoped memory for tpu_custom_call.1']
    #allocation4 [shape = 's32[1]{0}', space=sflag, size = 0x4, scoped, tag = 'scoped memory for tpu_custom_call.1']
    #allocation5 [shape = 'u8[512000]{0}', space=vmem, size = 0x7d000, scoped, tag = 'input window, operand 1, single buffered']
    #allocation6 [shape = 's32[1]{0}', space=sflag, size = 0x4, scoped, tag = 'scoped memory for tpu_custom_call.1']
    #allocation7 [shape = 'u8[65536]{0}', space=vmem, size = 0x10000, scoped, tag = 'input window, operand 3, single buffered']
    #allocation8 [shape = 'u8[1024]{0}', space=vmem, size = 0x400, scoped, tag = 'output window, operand 0, single buffered']
    %10 = vsyncpa [#allocation3], 0
    %11 = vsyncpa [#allocation6], 0
    %12 = vsyncpa [#allocation4], 0
    // Predicated region
    $region2: #{tpu_custom_call.1} parent=1 // pred_check
      _
    $region3: #{tpu_custom_call.1} parent=1 // pred_check_branch
      %14 = sbr.rel (0) target = $region5
    $region4: #{tpu_custom_call.1} parent=1 // pred_region
      %s16 = ssub.s32 256, 256
      %17 = vsyncadd [#allocation3], %s16
      %s19 = sshll.u32 [#allocation2], 4
      %s20 = int_to_ptr.vmem [resolvable:$true] %s19
      %22 = dma.hbm_to_vmem [thread:$0]  %s0, 256, %s20, [#allocation3]
    $region5: #{tpu_custom_call.1} parent=1 // pred_fallthru
      _
    // Predicated region
    $region6: #{tpu_custom_call.1} parent=1 // pred_check
      _
    $region7: #{tpu_custom_call.1} parent=1 // pred_check_branch
      %24 = sbr.rel (0) target = $region9
    $region8: #{tpu_custom_call.1} parent=1 // pred_region
      %s26 = ssub.s32 16000, 16000
      %27 = vsyncadd [#allocation6], %s26
      %s28 = sshll.u32 [#allocation5], 4
      %s29 = int_to_ptr.vmem [resolvable:$true] %s28
      %34 = dma.hbm_to_vmem [thread:$0]  %s1, 16000, %s29, [#allocation6], 128, 128, 8
    $region9: #{tpu_custom_call.1} parent=1 // pred_fallthru
      _
    // Predicated region
    $region10: #{tpu_custom_call.1} parent=1 // pred_check
      _
    $region11: #{tpu_custom_call.1} parent=1 // pred_check_branch
      %36 = sbr.rel (0) target = $region13
    $region12: #{tpu_custom_call.1} parent=1 // pred_region
      _
    $region13: #{tpu_custom_call.1} parent=1 // pred_fallthru
      _
    // Predicated region
    $region14: #{tpu_custom_call.1} parent=1 // pred_check
      _
    $region15: #{tpu_custom_call.1} parent=1 // pred_check_branch
      %38 = sbr.rel (0) target = $region17
    $region16: #{tpu_custom_call.1} parent=1 // pred_region
      %s40 = ssub.s32 2048, 2048
      %41 = vsyncadd [#allocation6], %s40
      %s42 = sshll.u32 [#allocation7], 4
      %s43 = int_to_ptr.vmem [resolvable:$true] %s42
      %48 = dma.hbm_to_vmem [thread:$0]  %s3, 2048, %s43, [#allocation6], 128, 128, 8
    $region17: #{tpu_custom_call.1} parent=1 // pred_fallthru
      _
    // Predicated region
    $region18: #{tpu_custom_call.1} parent=1 // pred_check
      _
    $region19: #{tpu_custom_call.1} parent=1 // pred_check_branch
      %50 = sbr.rel (0) target = $region21
    $region20: #{tpu_custom_call.1} parent=1 // pred_region
      _
    $region21: #{tpu_custom_call.1} parent=1 // pred_fallthru
      _
    // Predicated region
    $region22: #{tpu_custom_call.1} parent=1 // pred_check
      _
    $region23: #{tpu_custom_call.1} parent=1 // pred_check_branch
      %52 = sbr.rel (0) target = $region25
    $region24: #{tpu_custom_call.1} parent=1 // pred_region
      %53 = dma.done [#allocation3], 256
    $region25: #{tpu_custom_call.1} parent=1 // pred_fallthru
      _
    // Predicated region
    $region26: #{tpu_custom_call.1} parent=1 // pred_check
      _
    $region27: #{tpu_custom_call.1} parent=1 // pred_check_branch
      %55 = sbr.rel (0) target = $region29
    $region28: #{tpu_custom_call.1} parent=1 // pred_region
      %56 = dma.done [#allocation6], 16000
    $region29: #{tpu_custom_call.1} parent=1 // pred_fallthru
      _
    // Predicated region
    $region30: #{tpu_custom_call.1} parent=1 // pred_check
      _
    $region31: #{tpu_custom_call.1} parent=1 // pred_check_branch
      %58 = sbr.rel (0) target = $region33
    $region32: #{tpu_custom_call.1} parent=1 // pred_region
      %59 = dma.done [#allocation6], 2048
    $region33: #{tpu_custom_call.1} parent=1 // pred_fallthru
      _
    %v60 = vld [vmem:[#allocation2] sm:$0xff]
    %v61 = vld [vmem:[#allocation2 + $0x8] sm:$0xff]
    %v62 = vld [vmem:[#allocation5] sm:$0xff]
    %v63 = vld [vmem:[#allocation5 + $0x8] sm:$0xff]
    %v64 = vld [vmem:[#allocation5 + $0x10] sm:$0xff]
    %v65 = vld [vmem:[#allocation5 + $0x18] sm:$0xff]
    %v66 = vld [vmem:[#allocation5 + $0x20] sm:$0xff]
    %v67 = vld [vmem:[#allocation5 + $0x28] sm:$0xff]
    %v68 = vld [vmem:[#allocation5 + $0x30] sm:$0xff]
    %v69 = vld [vmem:[#allocation5 + $0x38] sm:$0xff]
    %v70 = vld [vmem:[#allocation5 + $0x40] sm:$0xff]
    %v71 = vld [vmem:[#allocation5 + $0x48] sm:$0xff]
    %v72 = vld [vmem:[#allocation5 + $0x50] sm:$0xff]
    %v73 = vld [vmem:[#allocation5 + $0x58] sm:$0xff]
    %v74 = vld [vmem:[#allocation5 + $0x60] sm:$0xff]
    %v75 = vld [vmem:[#allocation5 + $0x68] sm:$0xff]
    %v76 = vld [vmem:[#allocation5 + $0x70] sm:$0xff]
    %v77 = vld [vmem:[#allocation5 + $0x78] sm:$0xff]
    %v78 = vld [vmem:[#allocation5 + $0x80] sm:$0xff]
    %v79 = vld [vmem:[#allocation5 + $0x88] sm:$0xff]
    %v80 = vld [vmem:[#allocation5 + $0x90] sm:$0xff]
    %v81 = vld [vmem:[#allocation5 + $0x98] sm:$0xff]
    %v82 = vld [vmem:[#allocation5 + $0xa0] sm:$0xff]
    %v83 = vld [vmem:[#allocation5 + $0xa8] sm:$0xff]
    %v84 = vld [vmem:[#allocation5 + $0xb0] sm:$0xff]
    %v85 = vld [vmem:[#allocation5 + $0xb8] sm:$0xff]
    %v86 = vld [vmem:[#allocation5 + $0xc0] sm:$0xff]
    %v87 = vld [vmem:[#allocation5 + $0xc8] sm:$0xff]
    %v88 = vld [vmem:[#allocation5 + $0xd0] sm:$0xff]
    %v89 = vld [vmem:[#allocation5 + $0xd8] sm:$0xff]
    %v90 = vld [vmem:[#allocation5 + $0xe0] sm:$0xff]
    %v91 = vld [vmem:[#allocation5 + $0xe8] sm:$0xff]
    %v92 = vld [vmem:[#allocation5 + $0xf0] sm:$0xff]
    %v93 = vld [vmem:[#allocation5 + $0xf8] sm:$0xff]
    %v94 = vld [vmem:[#allocation5 + $0x100] sm:$0xff]
    %v95 = vld [vmem:[#allocation5 + $0x108] sm:$0xff]
    %v96 = vld [vmem:[#allocation5 + $0x110] sm:$0xff]
    %v97 = vld [vmem:[#allocation5 + $0x118] sm:$0xff]
    %v98 = vld [vmem:[#allocation5 + $0x120] sm:$0xff]
    %v99 = vld [vmem:[#allocation5 + $0x128] sm:$0xff]
    %v100 = vld [vmem:[#allocation5 + $0x130] sm:$0xff]
    %v101 = vld [vmem:[#allocation5 + $0x138] sm:$0xff]
    %v102 = vld [vmem:[#allocation5 + $0x140] sm:$0xff]
    %v103 = vld [vmem:[#allocation5 + $0x148] sm:$0xff]
    %v104 = vld [vmem:[#allocation5 + $0x150] sm:$0xff]
    %v105 = vld [vmem:[#allocation5 + $0x158] sm:$0xff]
    %v106 = vld [vmem:[#allocation5 + $0x160] sm:$0xff]
    %v107 = vld [vmem:[#allocation5 + $0x168] sm:$0xff]
    %v108 = vld [vmem:[#allocation5 + $0x170] sm:$0xff]
    %v109 = vld [vmem:[#allocation5 + $0x178] sm:$0xff]
    %v110 = vld [vmem:[#allocation5 + $0x180] sm:$0xff]
    %v111 = vld [vmem:[#allocation5 + $0x188] sm:$0xff]
    %v112 = vld [vmem:[#allocation5 + $0x190] sm:$0xff]
    %v113 = vld [vmem:[#allocation5 + $0x198] sm:$0xff]
    %v114 = vld [vmem:[#allocation5 + $0x1a0] sm:$0xff]
    %v115 = vld [vmem:[#allocation5 + $0x1a8] sm:$0xff]
    %v116 = vld [vmem:[#allocation5 + $0x1b0] sm:$0xff]
    %v117 = vld [vmem:[#allocation5 + $0x1b8] sm:$0xff]
    %v118 = vld [vmem:[#allocation5 + $0x1c0] sm:$0xff]
    %v119 = vld [vmem:[#allocation5 + $0x1c8] sm:$0xff]
    %v120 = vld [vmem:[#allocation5 + $0x1d0] sm:$0xff]
    %v121 = vld [vmem:[#allocation5 + $0x1d8] sm:$0xff]
    %v122 = vld [vmem:[#allocation5 + $0x1e0] sm:$0xff]
    %v123 = vld [vmem:[#allocation5 + $0x1e8] sm:$0xff]
    %v124 = vld [vmem:[#allocation5 + $0x1f0] sm:$0xff]
    %v125 = vld [vmem:[#allocation5 + $0x1f8] sm:$0xff]
    %v126 = vld [vmem:[#allocation5 + $0x200] sm:$0xff]
    %v127 = vld [vmem:[#allocation5 + $0x208] sm:$0xff]
    %v128 = vld [vmem:[#allocation5 + $0x210] sm:$0xff]
    %v129 = vld [vmem:[#allocation5 + $0x218] sm:$0xff]
    %v130 = vld [vmem:[#allocation5 + $0x220] sm:$0xff]
    %v131 = vld [vmem:[#allocation5 + $0x228] sm:$0xff]
    %v132 = vld [vmem:[#allocation5 + $0x230] sm:$0xff]
    %v133 = vld [vmem:[#allocation5 + $0x238] sm:$0xff]
    %v134 = vld [vmem:[#allocation5 + $0x240] sm:$0xff]
    %v135 = vld [vmem:[#allocation5 + $0x248] sm:$0xff]
    %v136 = vld [vmem:[#allocation5 + $0x250] sm:$0xff]
    %v137 = vld [vmem:[#allocation5 + $0x258] sm:$0xff]
    %v138 = vld [vmem:[#allocation5 + $0x260] sm:$0xff]
    %v139 = vld [vmem:[#allocation5 + $0x268] sm:$0xff]
    %v140 = vld [vmem:[#allocation5 + $0x270] sm:$0xff]
    %v141 = vld [vmem:[#allocation5 + $0x278] sm:$0xff]
    %v142 = vld [vmem:[#allocation5 + $0x280] sm:$0xff]
    %v143 = vld [vmem:[#allocation5 + $0x288] sm:$0xff]
    %v144 = vld [vmem:[#allocation5 + $0x290] sm:$0xff]
    %v145 = vld [vmem:[#allocation5 + $0x298] sm:$0xff]
    %v146 = vld [vmem:[#allocation5 + $0x2a0] sm:$0xff]
    %v147 = vld [vmem:[#allocation5 + $0x2a8] sm:$0xff]
    %v148 = vld [vmem:[#allocation5 + $0x2b0] sm:$0xff]
    %v149 = vld [vmem:[#allocation5 + $0x2b8] sm:$0xff]
    %v150 = vld [vmem:[#allocation5 + $0x2c0] sm:$0xff]
    %v151 = vld [vmem:[#allocation5 + $0x2c8] sm:$0xff]
    %v152 = vld [vmem:[#allocation5 + $0x2d0] sm:$0xff]
    %v153 = vld [vmem:[#allocation5 + $0x2d8] sm:$0xff]
    %v154 = vld [vmem:[#allocation5 + $0x2e0] sm:$0xff]
    %v155 = vld [vmem:[#allocation5 + $0x2e8] sm:$0xff]
    %v156 = vld [vmem:[#allocation5 + $0x2f0] sm:$0xff]
    %v157 = vld [vmem:[#allocation5 + $0x2f8] sm:$0xff]
    %v158 = vld [vmem:[#allocation5 + $0x300] sm:$0xff]
    %v159 = vld [vmem:[#allocation5 + $0x308] sm:$0xff]
    %v160 = vld [vmem:[#allocation5 + $0x310] sm:$0xff]
    %v161 = vld [vmem:[#allocation5 + $0x318] sm:$0xff]
    %v162 = vld [vmem:[#allocation5 + $0x320] sm:$0xff]
    %v163 = vld [vmem:[#allocation5 + $0x328] sm:$0xff]
    %v164 = vld [vmem:[#allocation5 + $0x330] sm:$0xff]
    %v165 = vld [vmem:[#allocation5 + $0x338] sm:$0xff]
    %v166 = vld [vmem:[#allocation5 + $0x340] sm:$0xff]
    %v167 = vld [vmem:[#allocation5 + $0x348] sm:$0xff]
    %v168 = vld [vmem:[#allocation5 + $0x350] sm:$0xff]
    %v169 = vld [vmem:[#allocation5 + $0x358] sm:$0xff]
    %v170 = vld [vmem:[#allocation5 + $0x360] sm:$0xff]
    %v171 = vld [vmem:[#allocation5 + $0x368] sm:$0xff]
    %v172 = vld [vmem:[#allocation5 + $0x370] sm:$0xff]
    %v173 = vld [vmem:[#allocation5 + $0x378] sm:$0xff]
    %v174 = vld [vmem:[#allocation5 + $0x380] sm:$0xff]
    %v175 = vld [vmem:[#allocation5 + $0x388] sm:$0xff]
    %v176 = vld [vmem:[#allocation5 + $0x390] sm:$0xff]
    %v177 = vld [vmem:[#allocation5 + $0x398] sm:$0xff]
    %v178 = vld [vmem:[#allocation5 + $0x3a0] sm:$0xff]
    %v179 = vld [vmem:[#allocation5 + $0x3a8] sm:$0xff]
    %v180 = vld [vmem:[#allocation5 + $0x3b0] sm:$0xff]
    %v181 = vld [vmem:[#allocation5 + $0x3b8] sm:$0xff]
    %v182 = vld [vmem:[#allocation5 + $0x3c0] sm:$0xff]
    %v183 = vld [vmem:[#allocation5 + $0x3c8] sm:$0xff]
    %v184 = vld [vmem:[#allocation5 + $0x3d0] sm:$0xff]
    %v185 = vld [vmem:[#allocation5 + $0x3d8] sm:$0xff]
    %v186 = vld [vmem:[#allocation5 + $0x3e0] sm:$0xff]
    %v187 = vld [vmem:[%s2] sm:$0x1]
    %v189 = vlaneseq
    %v190 = vshrl.u32 %v189, 7
    %v191 = vsub.s32 0, %v190
    %v192 = vrot.slane %v187, %v191
    %v196 = vcombine.high %v60, %v60
    %v198 = vunpack.c.l.s4 1983009808
    %v199 = vunpack.c.0.s8 %v198
    %v200 = vlaneseq
    %v201 = vshrl.u32 %v200, 7
    %v202 = vsub.s32 %v199, %v201
    %v203 = vrot.slane %v60, %v202
    %v205 = vunpack.c.l.s4 1983009808
    %v206 = vunpack.c.0.s8 %v205
    %v207 = vlaneseq
    %v208 = vshrl.u32 %v207, 7
    %v209 = vsub.s32 %v206, %v208
    %v210 = vrot.slane %v196, %v209
    %v211 = vcombine.high %v203, %v203
    %v212 = vcombine.high %v210, %v210
    %v213 = vcombine.high %v61, %v61
    %v215 = vunpack.c.l.s4 1983009808
    %v216 = vunpack.c.0.s8 %v215
    %v217 = vlaneseq
    %v218 = vshrl.u32 %v217, 7
    %v219 = vsub.s32 %v216, %v218
    %v220 = vrot.slane %v61, %v219
    %v222 = vunpack.c.l.s4 1983009808
    %v223 = vunpack.c.0.s8 %v222
    %v224 = vlaneseq
    %v225 = vshrl.u32 %v224, 7
    %v226 = vsub.s32 %v223, %v225
    %v227 = vrot.slane %v213, %v226
    %v228 = vcombine.high %v220, %v220
    %v229 = vcombine.high %v227, %v227
    %vm237 = vcmask 850944
    %v238 = vsel %vm237, %v229, 0
    %240 = vmatprep.subr.mxu0 0.0
    %241 = vmatpush1.msra.mxu0 %v62
    %242 = vmatprep.subr.mxu0 0.0
    %243 = vmatpush1.msra.mxu0 %v63
    %244 = vmatprep.subr.mxu0 0.0
    %245 = vmatpush1.msra.mxu0 %v64
    %246 = vmatprep.subr.mxu0 0.0
    %247 = vmatpush1.msra.mxu0 %v65
    %248 = vmatprep.subr.mxu0 0.0
    %249 = vmatpush1.msra.mxu0 %v66
    %250 = vmatprep.subr.mxu0 0.0
    %251 = vmatpush1.msra.mxu0 %v67
    %252 = vmatprep.subr.mxu0 0.0
    %253 = vmatpush1.msra.mxu0 %v68
    %254 = vmatprep.subr.mxu0 0.0
    %255 = vmatpush1.msra.mxu0 %v69
    %256 = vmatprep.subr.mxu0 0.0
    %257 = vmatpush1.msra.mxu0 %v70
    %258 = vmatprep.subr.mxu0 0.0
    %259 = vmatpush1.msra.mxu0 %v71
    %260 = vmatprep.subr.mxu0 0.0
    %261 = vmatpush1.msra.mxu0 %v72
    %262 = vmatprep.subr.mxu0 0.0
    %263 = vmatpush1.msra.mxu0 %v73
    %264 = vmatprep.subr.mxu0 0.0
    %265 = vmatpush1.msra.mxu0 %v74
    %266 = vmatprep.subr.mxu0 0.0
    %267 = vmatpush1.msra.mxu0 %v75
    %268 = vmatprep.subr.mxu0 0.0
    %269 = vmatpush1.msra.mxu0 %v76
    %270 = vmatprep.subr.mxu0 0.0
    %271 = vmatpush1.msra.mxu0 %v77
    %272 = vmatprep.subr.mxu0 0.0
    %273 = vmatpush1.msra.mxu0 %v78
    %274 = vmatprep.subr.mxu0 0.0
    %275 = vmatpush1.msra.mxu0 %v79
    %276 = vmatprep.subr.mxu0 0.0
    %277 = vmatpush1.msra.mxu0 %v80
    %278 = vmatprep.subr.mxu0 0.0
    %279 = vmatpush1.msra.mxu0 %v81
    %280 = vmatprep.subr.mxu0 0.0
    %281 = vmatpush1.msra.mxu0 %v82
    %282 = vmatprep.subr.mxu0 0.0
    %283 = vmatpush1.msra.mxu0 %v83
    %284 = vmatprep.subr.mxu0 0.0
    %285 = vmatpush1.msra.mxu0 %v84
    %286 = vmatprep.subr.mxu0 0.0
    %287 = vmatpush1.msra.mxu0 %v85
    %288 = vmatprep.subr.mxu0 0.0
    %289 = vmatpush1.msra.mxu0 %v86
    %290 = vmatprep.subr.mxu0 0.0
    %291 = vmatpush1.msra.mxu0 %v87
    %292 = vmatprep.subr.mxu0 0.0
    %293 = vmatpush1.msra.mxu0 %v88
    %294 = vmatprep.subr.mxu0 0.0
    %295 = vmatpush1.msra.mxu0 %v89
    %296 = vmatprep.subr.mxu0 0.0
    %297 = vmatpush1.msra.mxu0 %v90
    %298 = vmatprep.subr.mxu0 0.0
    %299 = vmatpush1.msra.mxu0 %v91
    %300 = vmatprep.subr.mxu0 0.0
    %301 = vmatpush1.msra.mxu0 %v92
    %302 = vmatprep.subr.mxu0 0.0
    %303 = vmatpush1.msra.mxu0 %v93
    %304 = vmatprep.mubr.f32.mxu0 %v211
    %305 = vmatmul.mubr.f32.gmra.mrb[0].mxu0 %v203
    %v306 = vpop.f32.mrb[0].mxu0
    %v307 = vadd.f32 %v192, %v306
    %v308 = vpop.f32.mrb[0].mxu0
    %309 = vdwg.mxu0
    %310 = vmatprep.subr.mxu0 0.0
    %311 = vmatpush1.msra.mxu0 %v94
    %312 = vmatprep.subr.mxu0 0.0
    %313 = vmatpush1.msra.mxu0 %v95
    %314 = vmatprep.subr.mxu0 0.0
    %315 = vmatpush1.msra.mxu0 %v96
    %316 = vmatprep.subr.mxu0 0.0
    %317 = vmatpush1.msra.mxu0 %v97
    %318 = vmatprep.subr.mxu0 0.0
    %319 = vmatpush1.msra.mxu0 %v98
    %320 = vmatprep.subr.mxu0 0.0
    %321 = vmatpush1.msra.mxu0 %v99
    %322 = vmatprep.subr.mxu0 0.0
    %323 = vmatpush1.msra.mxu0 %v100
    %324 = vmatprep.subr.mxu0 0.0
    %325 = vmatpush1.msra.mxu0 %v101
    %326 = vmatprep.subr.mxu0 0.0
    %327 = vmatpush1.msra.mxu0 %v102
    %328 = vmatprep.subr.mxu0 0.0
    %329 = vmatpush1.msra.mxu0 %v103
    %330 = vmatprep.subr.mxu0 0.0
    %331 = vmatpush1.msra.mxu0 %v104
    %332 = vmatprep.subr.mxu0 0.0
    %333 = vmatpush1.msra.mxu0 %v105
    %334 = vmatprep.subr.mxu0 0.0
    %335 = vmatpush1.msra.mxu0 %v106
    %336 = vmatprep.subr.mxu0 0.0
    %337 = vmatpush1.msra.mxu0 %v107
    %338 = vmatprep.subr.mxu0 0.0
    %339 = vmatpush1.msra.mxu0 %v108
    %340 = vmatprep.subr.mxu0 0.0
    %341 = vmatpush1.msra.mxu0 %v109
    %342 = vmatprep.subr.mxu0 0.0
    %343 = vmatpush1.msra.mxu0 %v110
    %344 = vmatprep.subr.mxu0 0.0
    %345 = vmatpush1.msra.mxu0 %v111
    %346 = vmatprep.subr.mxu0 0.0
    %347 = vmatpush1.msra.mxu0 %v112
    %348 = vmatprep.subr.mxu0 0.0
    %349 = vmatpush1.msra.mxu0 %v113
    %350 = vmatprep.subr.mxu0 0.0
    %351 = vmatpush1.msra.mxu0 %v114
    %352 = vmatprep.subr.mxu0 0.0
    %353 = vmatpush1.msra.mxu0 %v115
    %354 = vmatprep.subr.mxu0 0.0
    %355 = vmatpush1.msra.mxu0 %v116
    %356 = vmatprep.subr.mxu0 0.0
    %357 = vmatpush1.msra.mxu0 %v117
    %358 = vmatprep.subr.mxu0 0.0
    %359 = vmatpush1.msra.mxu0 %v118
    %360 = vmatprep.subr.mxu0 0.0
    %361 = vmatpush1.msra.mxu0 %v119
    %362 = vmatprep.subr.mxu0 0.0
    %363 = vmatpush1.msra.mxu0 %v120
    %364 = vmatprep.subr.mxu0 0.0
    %365 = vmatpush1.msra.mxu0 %v121
    %366 = vmatprep.subr.mxu0 0.0
    %367 = vmatpush1.msra.mxu0 %v122
    %368 = vmatprep.subr.mxu0 0.0
    %369 = vmatpush1.msra.mxu0 %v123
    %370 = vmatprep.subr.mxu0 0.0
    %371 = vmatpush1.msra.mxu0 %v124
    %372 = vmatprep.subr.mxu0 0.0
    %373 = vmatpush1.msra.mxu0 %v125
    %374 = vmatprep.mubr.f32.mxu0 %v212
    %375 = vmatmul.mubr.f32.gmra.mrb[0].mxu0 %v210
    %v376 = vpop.f32.mrb[0].mxu0
    %v377 = vadd.f32 %v307, %v376
    %v378 = vpop.f32.mrb[0].mxu0
    %379 = vdwg.mxu0
    %380 = vmatprep.subr.mxu0 0.0
    %381 = vmatpush1.msra.mxu0 %v126
    %382 = vmatprep.subr.mxu0 0.0
    %383 = vmatpush1.msra.mxu0 %v127
    %384 = vmatprep.subr.mxu0 0.0
    %385 = vmatpush1.msra.mxu0 %v128
    %386 = vmatprep.subr.mxu0 0.0
    %387 = vmatpush1.msra.mxu0 %v129
    %388 = vmatprep.subr.mxu0 0.0
    %389 = vmatpush1.msra.mxu0 %v130
    %390 = vmatprep.subr.mxu0 0.0
    %391 = vmatpush1.msra.mxu0 %v131
    %392 = vmatprep.subr.mxu0 0.0
    %393 = vmatpush1.msra.mxu0 %v132
    %394 = vmatprep.subr.mxu0 0.0
    %395 = vmatpush1.msra.mxu0 %v133
    %396 = vmatprep.subr.mxu0 0.0
    %397 = vmatpush1.msra.mxu0 %v134
    %398 = vmatprep.subr.mxu0 0.0
    %399 = vmatpush1.msra.mxu0 %v135
    %400 = vmatprep.subr.mxu0 0.0
    %401 = vmatpush1.msra.mxu0 %v136
    %402 = vmatprep.subr.mxu0 0.0
    %403 = vmatpush1.msra.mxu0 %v137
    %404 = vmatprep.subr.mxu0 0.0
    %405 = vmatpush1.msra.mxu0 %v138
    %406 = vmatprep.subr.mxu0 0.0
    %407 = vmatpush1.msra.mxu0 %v139
    %408 = vmatprep.subr.mxu0 0.0
    %409 = vmatpush1.msra.mxu0 %v140
    %410 = vmatprep.subr.mxu0 0.0
    %411 = vmatpush1.msra.mxu0 %v141
    %412 = vmatprep.subr.mxu0 0.0
    %413 = vmatpush1.msra.mxu0 %v142
    %414 = vmatprep.subr.mxu0 0.0
    %415 = vmatpush1.msra.mxu0 %v143
    %416 = vmatprep.subr.mxu0 0.0
    %417 = vmatpush1.msra.mxu0 %v144
    %418 = vmatprep.subr.mxu0 0.0
    %419 = vmatpush1.msra.mxu0 %v145
    %420 = vmatprep.subr.mxu0 0.0
    %421 = vmatpush1.msra.mxu0 %v146
    %422 = vmatprep.subr.mxu0 0.0
    %423 = vmatpush1.msra.mxu0 %v147
    %424 = vmatprep.subr.mxu0 0.0
    %425 = vmatpush1.msra.mxu0 %v148
    %426 = vmatprep.subr.mxu0 0.0
    %427 = vmatpush1.msra.mxu0 %v149
    %428 = vmatprep.subr.mxu0 0.0
    %429 = vmatpush1.msra.mxu0 %v150
    %430 = vmatprep.subr.mxu0 0.0
    %431 = vmatpush1.msra.mxu0 %v151
    %432 = vmatprep.subr.mxu0 0.0
    %433 = vmatpush1.msra.mxu0 %v152
    %434 = vmatprep.subr.mxu0 0.0
    %435 = vmatpush1.msra.mxu0 %v153
    %436 = vmatprep.subr.mxu0 0.0
    %437 = vmatpush1.msra.mxu0 %v154
    %438 = vmatprep.subr.mxu0 0.0
    %439 = vmatpush1.msra.mxu0 %v155
    %440 = vmatprep.subr.mxu0 0.0
    %441 = vmatpush1.msra.mxu0 %v156
    %442 = vmatprep.subr.mxu0 0.0
    %443 = vmatpush1.msra.mxu0 %v157
    %444 = vmatprep.mubr.f32.mxu0 %v228
    %445 = vmatmul.mubr.f32.gmra.mrb[0].mxu0 %v220
    %v446 = vpop.f32.mrb[0].mxu0
    %v447 = vadd.f32 %v377, %v446
    %v448 = vpop.f32.mrb[0].mxu0
    %449 = vdwg.mxu0
    %450 = vmatprep.subr.mxu0 0.0
    %451 = vmatpush1.msra.mxu0 %v158
    %452 = vmatprep.subr.mxu0 0.0
    %453 = vmatpush1.msra.mxu0 %v159
    %454 = vmatprep.subr.mxu0 0.0
    %455 = vmatpush1.msra.mxu0 %v160
    %456 = vmatprep.subr.mxu0 0.0
    %457 = vmatpush1.msra.mxu0 %v161
    %458 = vmatprep.subr.mxu0 0.0
    %459 = vmatpush1.msra.mxu0 %v162
    %460 = vmatprep.subr.mxu0 0.0
    %461 = vmatpush1.msra.mxu0 %v163
    %462 = vmatprep.subr.mxu0 0.0
    %463 = vmatpush1.msra.mxu0 %v164
    %464 = vmatprep.subr.mxu0 0.0
    %465 = vmatpush1.msra.mxu0 %v165
    %466 = vmatprep.subr.mxu0 0.0
    %467 = vmatpush1.msra.mxu0 %v166
    %468 = vmatprep.subr.mxu0 0.0
    %469 = vmatpush1.msra.mxu0 %v167
    %470 = vmatprep.subr.mxu0 0.0
    %471 = vmatpush1.msra.mxu0 %v168
    %472 = vmatprep.subr.mxu0 0.0
    %473 = vmatpush1.msra.mxu0 %v169
    %474 = vmatprep.subr.mxu0 0.0
    %475 = vmatpush1.msra.mxu0 %v170
    %476 = vmatprep.subr.mxu0 0.0
    %477 = vmatpush1.msra.mxu0 %v171
    %478 = vmatprep.subr.mxu0 0.0
    %479 = vmatpush1.msra.mxu0 %v172
    %480 = vmatprep.subr.mxu0 0.0
    %481 = vmatpush1.msra.mxu0 %v173
    %482 = vmatprep.subr.mxu0 0.0
    %483 = vmatpush1.msra.mxu0 %v174
    %484 = vmatprep.subr.mxu0 0.0
    %485 = vmatpush1.msra.mxu0 %v175
    %486 = vmatprep.subr.mxu0 0.0
    %487 = vmatpush1.msra.mxu0 %v176
    %488 = vmatprep.subr.mxu0 0.0
    %489 = vmatpush1.msra.mxu0 %v177
    %490 = vmatprep.subr.mxu0 0.0
    %491 = vmatpush1.msra.mxu0 %v178
    %492 = vmatprep.subr.mxu0 0.0
    %493 = vmatpush1.msra.mxu0 %v179
    %494 = vmatprep.subr.mxu0 0.0
    %495 = vmatpush1.msra.mxu0 %v180
    %496 = vmatprep.subr.mxu0 0.0
    %497 = vmatpush1.msra.mxu0 %v181
    %498 = vmatprep.subr.mxu0 0.0
    %499 = vmatpush1.msra.mxu0 %v182
    %500 = vmatprep.subr.mxu0 0.0
    %501 = vmatpush1.msra.mxu0 %v183
    %502 = vmatprep.subr.mxu0 0.0
    %503 = vmatpush1.msra.mxu0 %v184
    %504 = vmatprep.subr.mxu0 0.0
    %505 = vmatpush1.msra.mxu0 %v185
    %506 = vmatprep.subr.mxu0 0.0
    %507 = vmatpush1.msra.mxu0 %v186
    %508 = vmatprep.subr.mxu0 0.0
    %509 = vmatpush1.msra.mxu0 0.0
    %510 = vmatprep.subr.mxu0 0.0
    %511 = vmatpush1.msra.mxu0 0.0
    %512 = vmatprep.subr.mxu0 0.0
    %513 = vmatpush1.msra.mxu0 0.0
    %514 = vmatprep.mubr.f32.mxu0 %v238
    %515 = vmatmul.mubr.f32.gmra.mrb[0].mxu0 %v227
    %v516 = vpop.f32.mrb[0].mxu0
    %v517 = vadd.f32 %v447, %v516
    %v518 = vpop.f32.mrb[0].mxu0
    %519 = vdwg.mxu0
    %v520 = vmax.f32 %v517, 0.0
    %v521 = vld [vmem:[#allocation7] sm:$0xff]
    %v522 = vld [vmem:[#allocation7 + $0x8] sm:$0xff]
    %v523 = vld [vmem:[#allocation7 + $0x10] sm:$0xff]
    %v524 = vld [vmem:[#allocation7 + $0x18] sm:$0xff]
    %v525 = vld [vmem:[#allocation7 + $0x20] sm:$0xff]
    %v526 = vld [vmem:[#allocation7 + $0x28] sm:$0xff]
    %v527 = vld [vmem:[#allocation7 + $0x30] sm:$0xff]
    %v528 = vld [vmem:[#allocation7 + $0x38] sm:$0xff]
    %v529 = vld [vmem:[#allocation7 + $0x40] sm:$0xff]
    %v530 = vld [vmem:[#allocation7 + $0x48] sm:$0xff]
    %v531 = vld [vmem:[#allocation7 + $0x50] sm:$0xff]
    %v532 = vld [vmem:[#allocation7 + $0x58] sm:$0xff]
    %v533 = vld [vmem:[#allocation7 + $0x60] sm:$0xff]
    %v534 = vld [vmem:[#allocation7 + $0x68] sm:$0xff]
    %v535 = vld [vmem:[#allocation7 + $0x70] sm:$0xff]
    %v536 = vld [vmem:[#allocation7 + $0x78] sm:$0xff]
    %v537 = vld [vmem:[%s4] sm:$0x1]
    %v539 = vlaneseq
    %v540 = vshrl.u32 %v539, 7
    %v541 = vsub.s32 0, %v540
    %v542 = vrot.slane %v537, %v541
    %544 = vmatprep.subr.mxu0 0.0
    %545 = vmatpush1.msra.mxu0 %v521
    %546 = vmatprep.subr.mxu0 0.0
    %547 = vmatpush1.msra.mxu0 %v522
    %548 = vmatprep.subr.mxu0 0.0
    %549 = vmatpush1.msra.mxu0 %v523
    %550 = vmatprep.subr.mxu0 0.0
    %551 = vmatpush1.msra.mxu0 %v524
    %552 = vmatprep.subr.mxu0 0.0
    %553 = vmatpush1.msra.mxu0 %v525
    %554 = vmatprep.subr.mxu0 0.0
    %555 = vmatpush1.msra.mxu0 %v526
    %556 = vmatprep.subr.mxu0 0.0
    %557 = vmatpush1.msra.mxu0 %v527
    %558 = vmatprep.subr.mxu0 0.0
    %559 = vmatpush1.msra.mxu0 %v528
    %560 = vmatprep.subr.mxu0 0.0
    %561 = vmatpush1.msra.mxu0 %v529
    %562 = vmatprep.subr.mxu0 0.0
    %563 = vmatpush1.msra.mxu0 %v530
    %564 = vmatprep.subr.mxu0 0.0
    %565 = vmatpush1.msra.mxu0 %v531
    %566 = vmatprep.subr.mxu0 0.0
    %567 = vmatpush1.msra.mxu0 %v532
    %568 = vmatprep.subr.mxu0 0.0
    %569 = vmatpush1.msra.mxu0 %v533
    %570 = vmatprep.subr.mxu0 0.0
    %571 = vmatpush1.msra.mxu0 %v534
    %572 = vmatprep.subr.mxu0 0.0
    %573 = vmatpush1.msra.mxu0 %v535
    %574 = vmatprep.subr.mxu0 0.0
    %575 = vmatpush1.msra.mxu0 %v536
    %576 = vmatprep.subr.mxu0 0.0
    %577 = vmatpush1.msra.mxu0 0.0
    %578 = vmatprep.subr.mxu0 0.0
    %579 = vmatpush1.msra.mxu0 0.0
    %580 = vmatprep.subr.mxu0 0.0
    %581 = vmatpush1.msra.mxu0 0.0
    %582 = vmatprep.subr.mxu0 0.0
    %583 = vmatpush1.msra.mxu0 0.0
    %584 = vmatprep.subr.mxu0 0.0
    %585 = vmatpush1.msra.mxu0 0.0
    %586 = vmatprep.subr.mxu0 0.0
    %587 = vmatpush1.msra.mxu0 0.0
    %588 = vmatprep.subr.mxu0 0.0
    %589 = vmatpush1.msra.mxu0 0.0
    %590 = vmatprep.subr.mxu0 0.0
    %591 = vmatpush1.msra.mxu0 0.0
    %592 = vmatprep.subr.mxu0 0.0
    %593 = vmatpush1.msra.mxu0 0.0
    %594 = vmatprep.subr.mxu0 0.0
    %595 = vmatpush1.msra.mxu0 0.0
    %596 = vmatprep.subr.mxu0 0.0
    %597 = vmatpush1.msra.mxu0 0.0
    %598 = vmatprep.subr.mxu0 0.0
    %599 = vmatpush1.msra.mxu0 0.0
    %600 = vmatprep.subr.mxu0 0.0
    %601 = vmatpush1.msra.mxu0 0.0
    %602 = vmatprep.subr.mxu0 0.0
    %603 = vmatpush1.msra.mxu0 0.0
    %604 = vmatprep.subr.mxu0 0.0
    %605 = vmatpush1.msra.mxu0 0.0
    %606 = vmatprep.subr.mxu0 0.0
    %607 = vmatpush1.msra.mxu0 0.0
    %608 = vmatprep.mubr.f32.mxu0 0.0
    %609 = vmatmul.mubr.f32.gmra.mrb[0].mxu0 %v520
    %v610 = vpop.f32.mrb[0].mxu0
    %v611 = vadd.f32 %v542, %v610
    %v612 = vpop.f32.mrb[0].mxu0
    %613 = vdwg.mxu0
    %vm614 = vcmask 1041408
    %v615 = vsel %vm614, %v611, -inf
    %616 = vmax.xlane.f32.xlu0 %v615
    %v617 = vpop.xlane.xlu0 %616
    %v618 = vsub.f32 %v611, %v617
    %v619 = vmul.f32 %v618, 1.442695
    %v620 = vpow.pop %v619
    %v621 = vsel %vm614, %v620, 0.0
    %622 = vadd.xlane.f32.xlu0 %v621
    %v623 = vpop.xlane.xlu0 %622
    %v624 = vrcp.pop %v623
    %v625 = vmul.f32 %v620, %v624
    %vm626 = vcmask 9216
    %627 = vst.msk [vmem:[#allocation8] sm:$0x3] %vm626, %v625
    // Predicated region
    $region34: #{tpu_custom_call.1} parent=1 // pred_check
      _
    $region35: #{tpu_custom_call.1} parent=1 // pred_check_branch
      %629 = sbr.rel (0) target = $region37
    $region36: #{tpu_custom_call.1} parent=1 // pred_region
      %s631 = ssub.s32 32, 32
      %632 = vsyncadd [#allocation4], %s631
      %s634 = sshll.u32 [#allocation8], 4
      %s635 = int_to_ptr.vmem [resolvable:$true] %s634
      %637 = dma.vmem_to_hbm [thread:$0]  %s635, 32, %s5, [#allocation4]
    $region37: #{tpu_custom_call.1} parent=1 // pred_fallthru
      _
    // Predicated region
    $region38: #{tpu_custom_call.1} parent=1 // pred_check
      _
    $region39: #{tpu_custom_call.1} parent=1 // pred_check_branch
      %639 = sbr.rel (0) target = $region41
    $region40: #{tpu_custom_call.1} parent=1 // pred_region
      %640 = dma.done [#allocation4], 32
    $region41: #{tpu_custom_call.1} parent=1 // pred_fallthru
      _
    %641 = vsyncpa [#allocation3], 1
    %642 = vsyncpa [#allocation6], 1
    %643 = vsyncpa [#allocation4], 1

</llo_original>
